<compile_context>
chip_gen: v5e
topology: v5e:2x2
jax: 0.10.0
libtpu: 0.0.40
codegen_flags: <defaults>
</compile_context>

<pallas_src>
import functools

import jax
import jax.numpy as jnp
from jax.experimental import pallas as pl
from jax.experimental.pallas import tpu as pltpu

_VMEM_LIMIT_BYTES = 32 * 1024 * 1024    # explicit scoped-VMEM limit (safe on v5e/v6e/v7x)
_VMEM_BUDGET = 24 * 1024 * 1024         # working-set budget we size blocks against
_DEFAULT_BLOCK_BYTES = 2 * 1024 * 1024  # HBM-side block target (~2 MiB)


def _sublane_multiple(itemsize: int) -> int:
    # f32 -> 8, bf16/f16 -> 16, int8/fp8 -> 32 (sublane packing unit)
    return max(8, 32 // max(int(itemsize), 1))


def _pick_tile_rows(rows: int, feat: int, itemsize: int, target_block_bytes: int) -> int:
    mult = _sublane_multiple(itemsize)
    if rows <= mult:
        return rows                                   # full extent is always legal
    feat = max(feat, 1)
    bytes_per_row_hbm = feat * itemsize
    # double-buffered in + out blocks plus ~4 f32-sized temporaries per row
    bytes_per_row_ws = 4 * bytes_per_row_hbm + 16 * feat
    tr = max(mult, target_block_bytes // bytes_per_row_hbm)
    tr = min(tr, max(mult, _VMEM_BUDGET // bytes_per_row_ws))
    # keep >=8 grid steps when rows allow (pipelining); >=2 keeps both v7x TCs busy
    for min_steps in (8, 4, 2):
        cap = (rows // min_steps) // mult * mult
        if cap >= mult:
            tr = min(tr, cap)
            break
    tr = min(tr, rows)
    return max((tr // mult) * mult, mult)


# ----------------------------- single-pass path ------------------------------

def _ln_kernel(x_ref, o_ref, *, eps):
    x = x_ref[...].astype(jnp.float32)
    mean = jnp.mean(x, axis=-1, keepdims=True)
    c = x - mean
    var = jnp.mean(c * c, axis=-1, keepdims=True)
    o_ref[...] = (c * jax.lax.rsqrt(var + eps)).astype(o_ref.dtype)


def _ln_affine_kernel(x_ref, g_ref, b_ref, o_ref, *, eps):
    x = x_ref[...].astype(jnp.float32)
    mean = jnp.mean(x, axis=-1, keepdims=True)
    c = x - mean
    var = jnp.mean(c * c, axis=-1, keepdims=True)
    y = c * jax.lax.rsqrt(var + eps)
    y = y * g_ref[...].astype(jnp.float32) + b_ref[...].astype(jnp.float32)
    o_ref[...] = y.astype(o_ref.dtype)


# --------------------------- feature-split fallback ---------------------------

def _ln_stats_kernel(x_ref, mean_ref, rstd_ref, sum_sc, sq_sc, *, eps, feat, tile_feat):
    j = pl.program_id(1)

    @pl.when(j == 0)
    def _():
        sum_sc[...] = jnp.zeros_like(sum_sc)
        sq_sc[...] = jnp.zeros_like(sq_sc)

    x = x_ref[...].astype(jnp.float32)
    col = j * tile_feat + jax.lax.broadcasted_iota(jnp.int32, x.shape, 1)
    x = jnp.where(col < feat, x, 0.0)        # mask padded feature columns
    sum_sc[...] += jnp.sum(x, axis=-1, keepdims=True)
    sq_sc[...] += jnp.sum(x * x, axis=-1, keepdims=True)

    @pl.when(j == pl.num_programs(1) - 1)
    def _():
        n = float(feat)
        mean = sum_sc[...] / n
        var = jnp.maximum(sq_sc[...] / n - mean * mean, 0.0)
        mean_ref[...] = mean
        rstd_ref[...] = jax.lax.rsqrt(var + eps)


def _ln_apply_kernel(x_ref, mean_ref, rstd_ref, g_ref, b_ref, o_ref):
    x = x_ref[...].astype(jnp.float32)
    y = (x - mean_ref[...]) * rstd_ref[...]
    y = y * g_ref[...].astype(jnp.float32) + b_ref[...].astype(jnp.float32)
    o_ref[...] = y.astype(o_ref.dtype)


# --------------------------------- wrapper ------------------------------------

def pallas_layer_norm(x, normalized_shape, weight=None, bias=None, eps=1e-5,
                      *, block_bytes=_DEFAULT_BLOCK_BYTES, _force_feat_split=False):
    """Pallas equivalent of torch.nn.functional.layer_norm."""
    normalized_shape = tuple(int(d) for d in normalized_shape)
    nd = len(normalized_shape)
    assert nd >= 1 and x.shape[x.ndim - nd:] == normalized_shape, (
        "normalized_shape must match the trailing dims of input")

    feat = 1
    for d in normalized_shape:
        feat *= d
    rows = x.size // feat if feat else 0
    if rows == 0 or feat == 0:
        return x

    out_dtype = x.dtype
    itemsize = jnp.dtype(x.dtype).itemsize
    mult = _sublane_multiple(itemsize)
    x2 = x.reshape(rows, feat)
    eps = float(eps)

    # Minimal (tile_rows = mult) full-feature working set: double-buffered in+out
    # blocks plus ~4 f32 temporaries per row. If even that does not fit, split feat.
    min_ws = mult * feat * (4 * itemsize + 16)
    use_split = _force_feat_split or (min_ws > _VMEM_BUDGET)

    if not use_split:
        tile_rows = _pick_tile_rows(rows, feat, itemsize, block_bytes)
        grid = (pl.cdiv(rows, tile_rows),)
        x_spec = pl.BlockSpec((tile_rows, feat), lambda i: (i, 0))
        o_spec = pl.BlockSpec((tile_rows, feat), lambda i: (i, 0))
        out_shape = jax.ShapeDtypeStruct((rows, feat), out_dtype)
        cp = pltpu.CompilerParams(dimension_semantics=("parallel",),
                                  vmem_limit_bytes=_VMEM_LIMIT_BYTES)
        if weight is None and bias is None:
            out2 = pl.pallas_call(
                functools.partial(_ln_kernel, eps=eps),
                out_shape=out_shape,
                grid_spec=pltpu.PrefetchScalarGridSpec(
                    num_scalar_prefetch=0, grid=grid,
                    in_specs=[x_spec], out_specs=o_spec),
                compiler_params=cp,
            )(x2)
        else:
            gamma = weight if weight is not None else jnp.ones(normalized_shape, out_dtype)
            beta = bias if bias is not None else jnp.zeros(normalized_shape, out_dtype)
            p_spec = pl.BlockSpec((1, feat), lambda i: (0, 0))
            out2 = pl.pallas_call(
                functools.partial(_ln_affine_kernel, eps=eps),
                out_shape=out_shape,
                grid_spec=pltpu.PrefetchScalarGridSpec(
                    num_scalar_prefetch=0, grid=grid,
                    in_specs=[x_spec, p_spec, p_spec], out_specs=o_spec),
                compiler_params=cp,
            )(x2, gamma.reshape(1, feat), beta.reshape(1, feat))
        return out2.reshape(x.shape)

    # ----- feature-split path (very large normalized_shape) -----
    if rows <= mult:
        tile_rows = rows
    else:
        tile_rows = min((rows // mult) * mult, 256)
    tile_feat = max(128, (block_bytes // (max(tile_rows, 1) * 4)) // 128 * 128)
    tile_feat = min(tile_feat, max(128, (feat // 128) * 128))
    nR = pl.cdiv(rows, tile_rows)
    nF = pl.cdiv(feat, tile_feat)

    mean, rstd = pl.pallas_call(
        functools.partial(_ln_stats_kernel, eps=eps, feat=feat, tile_feat=tile_feat),
        out_shape=(jax.ShapeDtypeStruct((rows, 1), jnp.float32),
                   jax.ShapeDtypeStruct((rows, 1), jnp.float32)),
        grid_spec=pltpu.PrefetchScalarGridSpec(
            num_scalar_prefetch=0, grid=(nR, nF),
            in_specs=[pl.BlockSpec((tile_rows, tile_feat), lambda i, j: (i, j))],
            out_specs=(pl.BlockSpec((tile_rows, 1), lambda i, j: (i, 0)),
                       pl.BlockSpec((tile_rows, 1), lambda i, j: (i, 0))),
            scratch_shapes=[pltpu.VMEM((tile_rows, 1), jnp.float32),
                            pltpu.VMEM((tile_rows, 1), jnp.float32)]),
        compiler_params=pltpu.CompilerParams(
            dimension_semantics=("parallel", "arbitrary"),
            vmem_limit_bytes=_VMEM_LIMIT_BYTES),
    )(x2)

    gamma = weight if weight is not None else jnp.ones(normalized_shape, out_dtype)
    beta = bias if bias is not None else jnp.zeros(normalized_shape, out_dtype)
    out2 = pl.pallas_call(
        _ln_apply_kernel,
        out_shape=jax.ShapeDtypeStruct((rows, feat), out_dtype),
        grid_spec=pltpu.PrefetchScalarGridSpec(
            num_scalar_prefetch=0, grid=(nR, nF),
            in_specs=[pl.BlockSpec((tile_rows, tile_feat), lambda i, j: (i, j)),
                      pl.BlockSpec((tile_rows, 1), lambda i, j: (i, 0)),
                      pl.BlockSpec((tile_rows, 1), lambda i, j: (i, 0)),
                      pl.BlockSpec((1, tile_feat), lambda i, j: (0, j)),
                      pl.BlockSpec((1, tile_feat), lambda i, j: (0, j))],
            out_specs=pl.BlockSpec((tile_rows, tile_feat), lambda i, j: (i, j))),
        compiler_params=pltpu.CompilerParams(
            dimension_semantics=("parallel", "parallel"),
            vmem_limit_bytes=_VMEM_LIMIT_BYTES),
    )(x2, mean, rstd, gamma.reshape(1, feat), beta.reshape(1, feat))
    return out2.reshape(x.shape)


# --------------------------------- reference -----------------------------------

def _ref_layer_norm(x, normalized_shape, weight=None, bias=None, eps=1e-5):
    axes = tuple(range(x.ndim - len(normalized_shape), x.ndim))
    xf = x.astype(jnp.float32)
    mean = jnp.mean(xf, axis=axes, keepdims=True)
    var = jnp.mean((xf - mean) ** 2, axis=axes, keepdims=True)
    y = (xf - mean) * jax.lax.rsqrt(var + eps)
    if weight is not None:
        y = y * weight.astype(jnp.float32)
    if bias is not None:
        y = y + bias.astype(jnp.float32)
    return y.astype(x.dtype)


if __name__ == "__main__":
    key = jax.random.PRNGKey(0)
    k1, k2, k3, k4, k5, k6, k7 = jax.random.split(key, 7)
    eps = 1e-5

    # Case 1: default module call (weight=None, bias=None), f32
    x = jax.random.normal(k1, (2, 4, 16, 16), dtype=jnp.float32)
    normalized_shape = (16, 16)
    out = pallas_layer_norm(x, normalized_shape, None, None, eps)
    jax.block_until_ready(out)
    ref = _ref_layer_norm(x, normalized_shape, None, None, eps)
    assert out.shape == ref.shape and out.dtype == ref.dtype
    assert jnp.allclose(out, ref, atol=1e-5, rtol=1e-5), "plain layer_norm mismatch"

    # Case 2: with affine weight/bias, f32
    w = jax.random.normal(k2, normalized_shape, dtype=jnp.float32)
    b = jax.random.normal(k3, normalized_shape, dtype=jnp.float32)
    out_a = pallas_layer_norm(x, normalized_shape, w, b, eps)
    jax.block_until_ready(out_a)
    ref_a = _ref_layer_norm(x, normalized_shape, w, b, eps)
    assert jnp.allclose(out_a, ref_a, atol=1e-5, rtol=1e-5), "affine layer_norm mismatch"

    # Case 3: bf16 input (exercises sublane-packing-aware tiling, multi-step grid)
    xb = jax.random.normal(k4, (4, 8, 128), dtype=jnp.bfloat16)
    wb = jax.random.normal(k5, (128,), dtype=jnp.bfloat16)
    bb = jax.random.normal(k6, (128,), dtype=jnp.bfloat16)
    out_b = pallas_layer_norm(xb, (128,), wb, bb, eps)
    jax.block_until_ready(out_b)
    ref_b = _ref_layer_norm(xb, (128,), wb, bb, eps)
    assert out_b.dtype == ref_b.dtype
    assert jnp.allclose(out_b.astype(jnp.float32), ref_b.astype(jnp.float32),
                        atol=3e-2, rtol=3e-2), "bf16 layer_norm mismatch"

    # Case 4: feature-split fallback path (forced, with a partial feature tile)
    xs = jax.random.normal(k7, (16, 4672), dtype=jnp.float32)
    ws = jnp.ones((4672,), jnp.float32) * 0.5
    bs = jnp.ones((4672,), jnp.float32) * 0.25
    out_s = pallas_layer_norm(xs, (4672,), ws, bs, eps,
                              block_bytes=64 * 1024, _force_feat_split=True)
    jax.block_until_ready(out_s)
    ref_s = _ref_layer_norm(xs, (4672,), ws, bs, eps)
    assert jnp.allclose(out_s, ref_s, atol=1e-4, rtol=1e-4), "feat-split layer_norm mismatch"

    print("KERNEL_OK")
</pallas_src>

<mosaic_0001>
module attributes {stable_mosaic.version = 11 : i64} {
  func.func @_ln_kernel(%arg0: i32, %arg1: memref<8x256xf32, #tpu.memory_space<vmem>>, %arg2: memref<8x256xf32, #tpu.memory_space<vmem>>) attributes {dimension_semantics = [#tpu.dimension_semantics<parallel>], iteration_bounds = array<i64: 1>, scalar_prefetch = 0 : i64, scratch_operands = 0 : i64, tpu.core_type = #tpu.core_type<tc>, window_params = [{transform_indices = @transform_0, window_bounds = array<i64: 8, 256>}, {transform_indices = @transform_1, window_bounds = array<i64: 8, 256>}]} {
    %c0 = arith.constant 0 : index
    %c0_0 = arith.constant 0 : index
    %0 = vector.load %arg1[%c0, %c0_0] : memref<8x256xf32, #tpu.memory_space<vmem>>, vector<8x256xf32>
    %cst = arith.constant dense<0.000000e+00> : vector<8xf32>
    %1 = vector.multi_reduction <add>, %0, %cst [1] : vector<8x256xf32> to vector<8xf32>
    %2 = vector.shape_cast %1 : vector<8xf32> to vector<8x1xf32>
    %cst_1 = arith.constant 2.560000e+02 : f32
    %3 = vector.broadcast %cst_1 : f32 to vector<8x1xf32>
    %4 = arith.divf %2, %3 : vector<8x1xf32>
    %5 = vector.broadcast %4 : vector<8x1xf32> to vector<8x256xf32>
    %6 = arith.subf %0, %5 : vector<8x256xf32>
    %7 = arith.mulf %6, %6 : vector<8x256xf32>
    %cst_2 = arith.constant dense<0.000000e+00> : vector<8xf32>
    %8 = vector.multi_reduction <add>, %7, %cst_2 [1] : vector<8x256xf32> to vector<8xf32>
    %9 = vector.shape_cast %8 : vector<8xf32> to vector<8x1xf32>
    %cst_3 = arith.constant 2.560000e+02 : f32
    %10 = vector.broadcast %cst_3 : f32 to vector<8x1xf32>
    %11 = arith.divf %9, %10 : vector<8x1xf32>
    %cst_4 = arith.constant 9.99999974E-6 : f32
    %12 = vector.broadcast %cst_4 : f32 to vector<8x1xf32>
    %13 = arith.addf %11, %12 : vector<8x1xf32>
    %14 = math.rsqrt %13 : vector<8x1xf32>
    %15 = vector.broadcast %14 : vector<8x1xf32> to vector<8x256xf32>
    %16 = arith.mulf %6, %15 : vector<8x256xf32>
    %c0_5 = arith.constant 0 : index
    %c0_6 = arith.constant 0 : index
    %17 = vector.load %arg2[%c0_5, %c0_6] : memref<8x256xf32, #tpu.memory_space<vmem>>, vector<8x256xf32>
    tpu.vector_store %arg2[%c0_5, %c0_6], %16 {strides = array<i32>} : memref<8x256xf32, #tpu.memory_space<vmem>>, vector<8x256xf32>,
    return
  }
  func.func @transform_0(%arg0: i32) -> (i32, i32) {
    %c0_i32 = arith.constant 0 : i32
    %c0_i32_0 = arith.constant 0 : i32
    return %arg0, %c0_i32 : i32, i32
  }
  func.func @transform_1(%arg0: i32) -> (i32, i32) {
    %c0_i32 = arith.constant 0 : i32
    %c0_i32_0 = arith.constant 0 : i32
    return %arg0, %c0_i32 : i32, i32
  }
}

</mosaic_0001>

<llo_original>
// kernel: tpu_custom_call.1
$region0: #{tpu_custom_call.1}
  #allocation0 [shape = 'u32[]', space=smem, size = 0x4, offset = 0x4, fixed_abs, tag = 'smem constant byte address 0x4 - core index']
  #allocation1 [shape = 'u32[72,128]{1,0:T(1,128)}', space=vmem, size = 0x9000, scoped, tag = 'internal scratch']
  %s0 = inlined_call_operand.hbm [shape: f32[8,256], index: 0, kind: input, shape index: {}]
  %s1 = inlined_call_operand.hbm [shape: f32[8,256], index: 1, kind: output, shape index: {}]
  %s2 = sld [smem:[#allocation0]]
  $region18: #{tpu_custom_call.1} parent=0
    _
  %s4 = ssub.s32 1, %s2
  %s5 = scalar_select 0, %s4, %s2
  $region1: #{tpu_custom_call.1} parent=0
    #allocation2 [shape = 'u8[8192]{0}', space=vmem, size = 0x2000, scoped, tag = 'input window, operand 0, single buffered']
    #allocation3 [shape = 's32[1]{0}', space=sflag, size = 0x4, scoped, tag = 'scoped memory for tpu_custom_call.1']
    #allocation4 [shape = 's32[1]{0}', space=sflag, size = 0x4, scoped, tag = 'scoped memory for tpu_custom_call.1']
    #allocation5 [shape = 'u8[8192]{0}', space=vmem, size = 0x2000, scoped, tag = 'output window, operand 0, single buffered']
    %6 = vsyncpa [#allocation3], 0
    %7 = vsyncpa [#allocation4], 0
    // Predicated region
    $region2: #{tpu_custom_call.1} parent=1 // pred_check
      _
    $region3: #{tpu_custom_call.1} parent=1 // pred_check_branch
      %9 = sbr.rel (0) target = $region5
    $region4: #{tpu_custom_call.1} parent=1 // pred_region
      %11 = vsyncadd [#allocation3], 0
      %s13 = sshll.u32 %s0, 4
      %s14 = int_to_ptr.hbm [resolvable:$true] %s13
      %s15 = sshll.u32 [#allocation2], 4
      %s16 = int_to_ptr.vmem [resolvable:$true] %s15
      %18 = dma.hbm_to_vmem [thread:$0]  %s14, 256, %s16, [#allocation3]
    $region5: #{tpu_custom_call.1} parent=1 // pred_fallthru
      _
    // Predicated region
    $region6: #{tpu_custom_call.1} parent=1 // pred_check
      _
    $region7: #{tpu_custom_call.1} parent=1 // pred_check_branch
      %20 = sbr.rel (0) target = $region9
    $region8: #{tpu_custom_call.1} parent=1 // pred_region
      %22 = dma.done [#allocation3], 256
    $region9: #{tpu_custom_call.1} parent=1 // pred_fallthru
      _
    %v23 = vld [vmem:[#allocation2] sm:$0xff]
    %v24 = vld [vmem:[#allocation2 + $0x8] sm:$0xff]
    %v25 = vadd.f32 %v23, %v24
    %26 = vadd.xlane.f32.xlu0 %v25
    %v27 = vpop.xlane.xlu0 %26
    %v28 = vrcp.pop 256.0
    %v29 = vmul.f32 256.0, %v28
    %v30 = vsub.f32 1.0, %v29
    %v31 = vmul.f32 %v28, %v30
    %v32 = vadd.f32 %v28, %v31
    %vm33 = vweird.f32 %v28
    %v34 = vsel %vm33, %v28, %v32
    %v35 = vmul.f32 %v27, %v34
    %v36 = vsub.f32 %v23, %v35
    %v37 = vsub.f32 %v24, %v35
    %v38 = vmul.f32 %v36, %v36
    %v39 = vmul.f32 %v37, %v37
    %v40 = vadd.f32 %v38, %v39
    %41 = vadd.xlane.f32.xlu0 %v40
    %v42 = vpop.xlane.xlu0 %41
    %v43 = vmul.f32 %v42, %v34
    %v44 = vadd.f32 %v43, 1e-05
    %v45 = vrsqrt.pop %v44
    %v46 = vmul.f32 %v45, %v44
    %v47 = vmul.f32 %v46, %v45
    %v48 = vmul.f32 0.5, %v47
    %v49 = vsub.f32 1.5, %v48
    %v50 = vmul.f32 %v45, %v49
    %vm51 = vweird.f32 %v44
    %vm52 = vweird.f32 %v45
    %vm53 = vmor %vm51, %vm52
    %v54 = vsel %vm53, %v45, %v50
    %v55 = vmul.f32 %v36, %v54
    %v56 = vmul.f32 %v37, %v54
    %57 = vst [vmem:[#allocation5] sm:$0xff] %v55
    %58 = vst [vmem:[#allocation5 + $0x8] sm:$0xff] %v56
    // Predicated region
    $region10: #{tpu_custom_call.1} parent=1 // pred_check
      _
    $region11: #{tpu_custom_call.1} parent=1 // pred_check_branch
      %60 = sbr.rel (0) target = $region13
    $region12: #{tpu_custom_call.1} parent=1 // pred_region
      %62 = vsyncadd [#allocation4], 0
      %s64 = sshll.u32 [#allocation5], 4
      %s65 = int_to_ptr.vmem [resolvable:$true] %s64
      %s66 = sshll.u32 %s1, 4
      %s67 = int_to_ptr.hbm [resolvable:$true] %s66
      %69 = dma.vmem_to_hbm [thread:$0]  %s65, 256, %s67, [#allocation4]
    $region13: #{tpu_custom_call.1} parent=1 // pred_fallthru
      _
    // Predicated region
    $region14: #{tpu_custom_call.1} parent=1 // pred_check
      _
    $region15: #{tpu_custom_call.1} parent=1 // pred_check_branch
      %71 = sbr.rel (0) target = $region17
    $region16: #{tpu_custom_call.1} parent=1 // pred_region
      %73 = dma.done [#allocation4], 256
    $region17: #{tpu_custom_call.1} parent=1 // pred_fallthru
      _
    %74 = vsyncpa [#allocation3], 1
    %75 = vsyncpa [#allocation4], 1

</llo_original>
